<compile_context>
chip_gen: v6e
topology: v6e:2x2x1
jax: 0.10.0
libtpu: 0.0.40
codegen_flags: <defaults>
</compile_context>

<pallas_src>
import functools

import numpy as np
import jax
import jax.numpy as jnp
from jax.experimental import pallas as pl
from jax.experimental.pallas import tpu as pltpu


# ---------------------------------------------------------------------------
# Import-time probe: pin down pltpu.roll's rotation convention so the conv
# shifts are correct regardless of the jax version.  Runs once, outside any
# jit trace (the previous lazy/lru_cache version could concretize mid-trace).
# ---------------------------------------------------------------------------
def _probe_roll_is_jnp_like() -> bool:
    """True if pltpu.roll(x, s, axis) == jnp.roll(x, s, axis),
    i.e. out[i] = in[(i - s) % n]."""
    def kernel(x_ref, o_ref):
        o_ref[...] = pltpu.roll(x_ref[...], 1, axis=1)

    x = jax.lax.broadcasted_iota(jnp.int32, (8, 128), 1).astype(jnp.float32)
    y = pl.pallas_call(
        kernel, out_shape=jax.ShapeDtypeStruct((8, 128), jnp.float32))(x)
    return bool(y[0, 1] == 0.0)


_ROLL_IS_JNP_LIKE = _probe_roll_is_jnp_like()


# ---------------------------------------------------------------------------
# Fused ConvNeXt block kernel.
#   grid = (batch_tiles, row_bands)
#   band 0: depthwise conv + LayerNorm for the whole tile -> bf16 VMEM scratch
#   every band: pointwise MLP on that band's lanes + layer scale + residual
# ---------------------------------------------------------------------------
def _convnext_block_kernel(x_ref, dww_ref, dwb_ref, mask_ref,
                           lnw_ref, lnb_ref, w1_ref, b1_ref, w2_ref, b2_ref,
                           gamma_ref, o_ref, xn_ref, *, taps, eps, mxu_dtype):
    bt = x_ref.shape[0]              # images per grid step
    bl = o_ref.shape[2]              # lanes (= band_rows * W) per band step
    band = pl.program_id(1)

    # ---- Phase 1 (band 0 only): 7x7 depthwise conv + LayerNorm, cached ----
    @pl.when(band == 0)
    def _():
        dww = dww_ref[...]           # (C, 49)  hoisted, sliced in-register
        dwb = dwb_ref[...]           # (C, 1)
        lnw = lnw_ref[...]           # (C, 1)
        lnb = lnb_ref[...]           # (C, 1)
        for b in range(bt):
            xb = x_ref[b]            # (C, N) f32, lane-dense
            # Each tap = flat lane roll (XLU) + masked per-channel FMA; the
            # (1, N) boundary mask realizes zero padding (and blocks any
            # wrap-around), so no padded copy of the image exists anywhere.
            # TODO(synk): on v6e/v7x run this gather in bf16 (f32 acc) to
            # halve vreg pressure; keep f32 on v5e (no bf16 VPU).
            acc = jnp.zeros_like(xb)
            for t, (s, amt) in enumerate(taps):
                w_col = dww[:, t:t + 1]                     # (C, 1)
                if s == 0:                                  # center tap
                    acc = acc + xb * w_col
                else:
                    tap = pltpu.roll(xb, amt, axis=1) * mask_ref[t:t + 1, :]
                    acc = acc + tap * w_col
            acc = acc + dwb
            # LayerNorm over channels, single-pass variance E[x^2] - E[x]^2
            # (biased variance, eps inside rsqrt, matching torch).
            m1 = jnp.mean(acc, axis=0, keepdims=True)               # (1, N)
            m2 = jnp.mean(acc * acc, axis=0, keepdims=True)         # (1, N)
            var = jnp.maximum(m2 - m1 * m1, 0.0)
            xn = (acc - m1) * jax.lax.rsqrt(var + eps)
            xn_ref[b] = (xn * lnw + lnb).astype(mxu_dtype)

    # ---- Phase 2 (every band): N-tiled pointwise MLP + scale + residual ----
    off = pl.multiple_of(band * bl, bl)
    w1 = w1_ref[...]                 # (E*C, C)  bf16 operand for the MXU
    b1 = b1_ref[...]                 # (E*C, 1)
    w2 = w2_ref[...]                 # (C, E*C)  bf16
    b2 = b2_ref[...]                 # (C, 1)
    gamma = gamma_ref[...]           # (C, 1)
    for b in range(bt):
        xn_c = xn_ref[b, :, pl.ds(off, bl)]                 # (C, BL) bf16
        h = jnp.dot(w1, xn_c, preferred_element_type=jnp.float32) + b1
        h = jax.nn.gelu(h, approximate=False)               # exact erf (nn.GELU)
        y = jnp.dot(w2, h.astype(mxu_dtype),
                    preferred_element_type=jnp.float32) + b2
        # DropPath = identity; residual is the resident input block itself.
        o_ref[b] = y * gamma + x_ref[b, :, pl.ds(off, bl)]


# ---------------------------------------------------------------------------
# Tiling heuristics.
# ---------------------------------------------------------------------------
def _pick_band_rows(H, W, ec, lane_budget_bytes):
    """Rows per band: bands tile H exactly, band*W stays a multiple of 128
    (unmasked lane-dense stores) or covers the whole image, the (E*C, band*W)
    f32 MLP intermediate stays under budget; prefer >=2 bands (pipelining)."""
    valid = [r for r in range(1, H + 1)
             if H % r == 0 and ((r * W) % 128 == 0 or r == H)]
    fits = [r for r in valid if ec * r * W * 4 <= lane_budget_bytes]
    multi = [r for r in fits if H // r >= 2]
    if multi:
        return max(multi)
    if fits:
        return max(fits)
    return min(valid)


def _pick_batch_tile(B, C, N, bl, ec, vmem_budget_bytes):
    """Images per grid step: largest divisor of B whose per-step footprint
    (double-buffered in/out blocks + bf16 LN scratch + band MLP temps) fits."""
    def est(bt):
        return (2 * bt * C * N * 4        # x block (double buffered)
                + bt * C * N * 2          # bf16 LN scratch
                + 2 * bt * C * bl * 4     # out block (double buffered)
                + 2 * ec * bl * 4)        # h / GELU temporaries
    cands = [bt for bt in range(1, B + 1)
             if B % bt == 0 and est(bt) <= vmem_budget_bytes]
    return max(cands) if cands else 1


# ---------------------------------------------------------------------------
# Wrapper.
# ---------------------------------------------------------------------------
def convnext_block(x_nchw, params, *, eps=1e-6, mxu_dtype=jnp.bfloat16,
                   vmem_budget_bytes=16 << 20, mlp_lane_budget_bytes=4 << 20):
    """ConvNeXtBlock forward (NCHW in / NCHW out, DropPath = identity).

    params = (dw_w[K,K,C], dw_b[C], ln_w[C], ln_b[C],
              w1[E*C, C]  (= torch Linear1.weight), b1[E*C],
              w2[C, E*C]  (= torch Linear2.weight), b2[C], gamma[C])
    """
    dw_w, dw_b, ln_w, ln_b, w1, b1, w2, b2, gamma = params
    B, C, H, W = x_nchw.shape
    K = dw_w.shape[0]
    pad = K // 2
    EC = w1.shape[0]
    N = H * W

    # Free reshape: stays NCHW in HBM; kernel sees lane-dense (C, H*W) slabs.
    x = x_nchw.reshape(B, C, N).astype(jnp.float32)
    # TODO(synk): accept/emit bf16 at this boundary when the surrounding net
    # is bf16 (halves the dominant HBM I/O at production sizes).

    # Static per-tap shift amounts and boundary masks (host side).
    hh, ww = np.divmod(np.arange(N), W)
    taps = []
    mask_np = np.zeros((K * K, N), np.float32)
    for ki in range(K):
        for kj in range(K):
            di, dj = ki - pad, kj - pad
            t = ki * K + kj
            s = di * W + dj                                   # flat src offset
            amt = (-s) % N if _ROLL_IS_JNP_LIKE else s % N    # roll argument
            taps.append((s, amt))
            valid = ((hh + di >= 0) & (hh + di < H) &
                     (ww + dj >= 0) & (ww + dj < W))
            mask_np[t] = valid.astype(np.float32)
    masks = jnp.asarray(mask_np)                              # (K*K, N)

    dww = jnp.asarray(dw_w, jnp.float32).reshape(K * K, C).T  # (C, K*K)
    col = lambda v: jnp.asarray(v, jnp.float32).reshape(-1, 1)
    dwb, lnw, lnb, b1c, b2c, gmc = map(col, (dw_b, ln_w, ln_b, b1, b2, gamma))
    w1m = jnp.asarray(w1, mxu_dtype)                          # (EC, C)
    w2m = jnp.asarray(w2, mxu_dtype)                          # (C, EC)

    # Tiling: row bands bound the (E*C, BL) MLP intermediate and give the
    # pipeline / megacore more steps; batch tiles keep per-step blocks big.
    band_rows = _pick_band_rows(H, W, EC, mlp_lane_budget_bytes)
    BL = band_rows * W
    n_bands = H // band_rows
    Bt = _pick_batch_tile(B, C, N, BL, EC, vmem_budget_bytes)

    kernel = functools.partial(_convnext_block_kernel,
                               taps=tuple(taps), eps=eps, mxu_dtype=mxu_dtype)

    full = lambda a: pl.BlockSpec(a.shape, lambda i, j: (0,) * a.ndim)
    # TODO(synk): single-buffer these grid-invariant operands
    # (pipeline_mode=pl.Buffered(1)) to save VMEM at production sizes.

    cost = pl.CostEstimate(
        flops=int(B * (2 * K * K * C * N + 4 * C * EC * N + 10 * C * N)),
        transcendentals=int(B * EC * N),
        bytes_accessed=int(2 * B * C * N * 4
                           + (w1m.size + w2m.size) * w1m.dtype.itemsize
                           + masks.size * 4
                           + 4 * (C * K * K + 5 * C + EC)),
    )

    out = pl.pallas_call(
        kernel,
        out_shape=jax.ShapeDtypeStruct((B, C, N), jnp.float32),
        grid_spec=pltpu.PrefetchScalarGridSpec(
            num_scalar_prefetch=0,
            grid=(B // Bt, n_bands),
            in_specs=[
                # x is revisited across the band axis (index map ignores j):
                # DMA'd once per batch tile, doubles as the residual source.
                pl.BlockSpec((Bt, C, N), lambda i, j: (i, 0, 0)),
                full(dww), full(dwb), full(masks),
                full(lnw), full(lnb),
                full(w1m), full(b1c), full(w2m), full(b2c), full(gmc),
            ],
            out_specs=pl.BlockSpec((Bt, C, BL), lambda i, j: (i, 0, j)),
            scratch_shapes=[pltpu.VMEM((Bt, C, N), mxu_dtype)],  # LN output
        ),
        compiler_params=pltpu.CompilerParams(
            dimension_semantics=("parallel", "arbitrary")),
        cost_estimate=cost,
    )(x, dww, dwb, masks, lnw, lnb, w1m, b1c, w2m, b2c, gmc)

    # TODO(synk): for very large images (e.g. C=384, H=W=56) the band-0 conv
    # still touches a whole (C, H*W) image; band the conv itself with a
    # halo'd manual row-band DMA (make_async_copy) to cut that footprint too.
    return out.reshape(B, C, H, W)


# ---------------------------------------------------------------------------
# Plain-JAX reference mirroring the PyTorch forward, for validation.
# ---------------------------------------------------------------------------
def convnext_block_reference(x_nchw, params, *, eps=1e-6):
    dw_w, dw_b, ln_w, ln_b, w1, b1, w2, b2, gamma = params
    x = jnp.transpose(x_nchw, (0, 2, 3, 1)).astype(jnp.float32)   # NHWC
    B, H, W, C = x.shape
    K = dw_w.shape[0]
    pad = K // 2
    xp = jnp.pad(x, ((0, 0), (pad, pad), (pad, pad), (0, 0)))
    acc = jnp.zeros_like(x)
    for ki in range(K):
        for kj in range(K):
            acc = acc + xp[:, ki:ki + H, kj:kj + W, :] * dw_w[ki, kj, :]
    acc = acc + dw_b
    u = acc.mean(-1, keepdims=True)
    s = ((acc - u) ** 2).mean(-1, keepdims=True)
    xn = (acc - u) / jnp.sqrt(s + eps) * ln_w + ln_b
    h = jax.nn.gelu(xn @ w1.T + b1, approximate=False)
    y = (h @ w2.T + b2) * gamma
    y = y + x
    return jnp.transpose(y, (0, 3, 1, 2))


def init_params(key, fdim, expansion, layer_scale_init):
    ks = jax.random.split(key, 6)
    dw_w = 0.1 * jax.random.normal(ks[0], (7, 7, fdim), jnp.float32)
    dw_b = 0.1 * jax.random.normal(ks[1], (fdim,), jnp.float32)
    ln_w = jnp.ones((fdim,), jnp.float32)
    ln_b = jnp.zeros((fdim,), jnp.float32)
    # torch orientation: Linear1.weight (E*C, C), Linear2.weight (C, E*C)
    w1 = 0.1 * jax.random.normal(ks[2], (expansion * fdim, fdim), jnp.float32)
    b1 = 0.1 * jax.random.normal(ks[3], (expansion * fdim,), jnp.float32)
    w2 = 0.1 * jax.random.normal(ks[4], (fdim, expansion * fdim), jnp.float32)
    b2 = 0.1 * jax.random.normal(ks[5], (fdim,), jnp.float32)
    gamma = layer_scale_init * jnp.ones((fdim,), jnp.float32)
    return (dw_w, dw_b, ln_w, ln_b, w1, b1, w2, b2, gamma)


if __name__ == "__main__":
    # ConvNeXtBlock(FDim=32, Expansion=4, DropPathRate=0.0,
    #               LayerScaleInitial=1e-6, Training=False)
    B, FDIM, H, W = 2, 32, 16, 16
    EXPANSION = 4
    LAYER_SCALE_INIT = 1e-6

    key = jax.random.PRNGKey(0)
    k_x, k_p = jax.random.split(key)
    x = jax.random.normal(k_x, (B, FDIM, H, W), jnp.float32)       # NCHW input

    # Structural check with layer_scale = 1.0 so the conv/LN/MLP branch is not
    # hidden behind gamma=1e-6.  Loose tolerance absorbs bf16-MXU vs. default
    # XLA f32-matmul precision differences; structural bugs would be O(0.1+).
    params_ls1 = init_params(k_p, FDIM, EXPANSION, 1.0)
    out1 = jax.block_until_ready(convnext_block(x, params_ls1))
    ref1 = convnext_block_reference(x, params_ls1)
    assert out1.shape == (B, FDIM, H, W)
    assert jnp.allclose(out1, ref1, atol=5e-2, rtol=5e-2), (
        "structural mismatch vs reference, max abs err "
        f"{float(jnp.max(jnp.abs(out1 - ref1))):.3e}")

    # Module-configuration check (LayerScaleInitial = 1e-6).
    params = init_params(k_p, FDIM, EXPANSION, LAYER_SCALE_INIT)
    out = jax.block_until_ready(convnext_block(x, params))
    ref = convnext_block_reference(x, params)
    assert jnp.allclose(out, ref, atol=1e-4, rtol=1e-4), "mismatch vs reference"

    print("KERNEL_OK")
</pallas_src>

<mosaic_0001>
module attributes {stable_mosaic.version = 11 : i64} {
  func.func @kernel(%arg0: memref<8x128xf32, #tpu.memory_space<vmem>>, %arg1: memref<8x128xf32, #tpu.memory_space<vmem>>) attributes {dimension_semantics = [], scalar_prefetch = 0 : i64, scratch_operands = 0 : i64, tpu.core_type = #tpu.core_type<tc>} {
    %c0 = arith.constant 0 : index
    %c0_0 = arith.constant 0 : index
    %0 = vector.load %arg0[%c0, %c0_0] : memref<8x128xf32, #tpu.memory_space<vmem>>, vector<8x128xf32>
    %c1_i32 = arith.constant 1 : i32
    %1 = tpu.dynamic_rotate %0 by %c1_i32 dim 1 : vector<8x128xf32>, i32 -> vector<8x128xf32>
    %c0_1 = arith.constant 0 : index
    %c0_2 = arith.constant 0 : index
    %2 = vector.load %arg1[%c0_1, %c0_2] : memref<8x128xf32, #tpu.memory_space<vmem>>, vector<8x128xf32>
    tpu.vector_store %arg1[%c0_1, %c0_2], %1 {strides = array<i32>} : memref<8x128xf32, #tpu.memory_space<vmem>>, vector<8x128xf32>,
    return
  }
}

</mosaic_0001>

<llo_original>
// kernel: tpu_custom_call.1
$region0: #{tpu_custom_call.1}
  #allocation0 [shape = 'u32[]', space=smem, size = 0x4, offset = 0x4, fixed_abs, tag = 'smem constant byte address 0x4 - core index']
  #allocation1 [shape = 'u32[144,128]{1,0:T(1,128)}', space=vmem, size = 0x12000, scoped, tag = 'internal scratch']
  %s0 = inlined_call_operand.hbm [shape: f32[8,128], index: 0, kind: input, shape index: {}]
  %s1 = inlined_call_operand.hbm [shape: f32[8,128], index: 1, kind: output, shape index: {}]
  %s2 = sld [smem:[#allocation0]]
  $region18: #{tpu_custom_call.1} parent=0
    _
  %s4 = ssub.s32 1, %s2
  %s5 = scalar_select 0, %s4, %s2
  $region1: #{tpu_custom_call.1} parent=0
    #allocation2 [shape = 'u8[4096]{0}', space=vmem, size = 0x1000, scoped, tag = 'input window, operand 0, single buffered']
    #allocation3 [shape = 's32[1]{0}', space=sflag, size = 0x4, scoped, tag = 'scoped memory for tpu_custom_call.1']
    #allocation4 [shape = 's32[1]{0}', space=sflag, size = 0x4, scoped, tag = 'scoped memory for tpu_custom_call.1']
    #allocation5 [shape = 'u8[4096]{0}', space=vmem, size = 0x1000, scoped, tag = 'output window, operand 0, single buffered']
    %6 = vsyncpa [#allocation3], 0
    %7 = vsyncpa [#allocation4], 0
    // Predicated region
    $region2: #{tpu_custom_call.1} parent=1 // pred_check
      _
    $region3: #{tpu_custom_call.1} parent=1 // pred_check_branch
      %9 = sbr.rel (0) target = $region5
    $region4: #{tpu_custom_call.1} parent=1 // pred_region
      %s11 = ssub.s32 128, 128
      %12 = vsyncadd [#allocation3], %s11
      %s14 = sshll.u32 [#allocation2], 4
      %s15 = int_to_ptr.vmem [resolvable:$true] %s14
      %17 = dma.hbm_to_vmem [thread:$0]  %s0, 128, %s15, [#allocation3]
    $region5: #{tpu_custom_call.1} parent=1 // pred_fallthru
      _
    // Predicated region
    $region6: #{tpu_custom_call.1} parent=1 // pred_check
      _
    $region7: #{tpu_custom_call.1} parent=1 // pred_check_branch
      %19 = sbr.rel (0) target = $region9
    $region8: #{tpu_custom_call.1} parent=1 // pred_region
      %20 = dma.done [#allocation3], 128
    $region9: #{tpu_custom_call.1} parent=1 // pred_fallthru
      _
    %v21 = vld [vmem:[#allocation2] sm:$0xff]
    %22 = vrot.lane.b32.xlu0 %v21, 1
    %v23 = vpop.permute.xlu0 %22
    %24 = vst [vmem:[#allocation5] sm:$0xff] %v23
    // Predicated region
    $region10: #{tpu_custom_call.1} parent=1 // pred_check
      _
    $region11: #{tpu_custom_call.1} parent=1 // pred_check_branch
      %26 = sbr.rel (0) target = $region13
    $region12: #{tpu_custom_call.1} parent=1 // pred_region
      %s28 = ssub.s32 128, 128
      %29 = vsyncadd [#allocation4], %s28
      %s31 = sshll.u32 [#allocation5], 4
      %s32 = int_to_ptr.vmem [resolvable:$true] %s31
      %34 = dma.vmem_to_hbm [thread:$0]  %s32, 128, %s1, [#allocation4]
    $region13: #{tpu_custom_call.1} parent=1 // pred_fallthru
      _
    // Predicated region
    $region14: #{tpu_custom_call.1} parent=1 // pred_check
      _
    $region15: #{tpu_custom_call.1} parent=1 // pred_check_branch
      %36 = sbr.rel (0) target = $region17
    $region16: #{tpu_custom_call.1} parent=1 // pred_region
      %37 = dma.done [#allocation4], 128
    $region17: #{tpu_custom_call.1} parent=1 // pred_fallthru
      _
    %38 = vsyncpa [#allocation3], 1
    %39 = vsyncpa [#allocation4], 1

</llo_original>
